<compile_context>
chip_gen: v7x
topology: tpu7x:2x2x1
jax: 0.10.0
libtpu: 0.0.40
codegen_flags: <defaults>
</compile_context>

<pallas_src>
import functools

import jax
import jax.numpy as jnp
from jax.experimental import pallas as pl
from jax.experimental.pallas import tpu as pltpu

EPS = 1e-5

_LANE = 128
_TARGET_BLOCK_BYTES = 4 << 20          # ~4 MiB f32 x-block; in+out double-buffered
_VMEM_LIMIT_BYTES = 48 * 1024 * 1024   # < v7x 64 MiB physical, > 32 MiB default scoped


def _choose_tiles(B, T, C, bytes_per_elem=4):
    """Pick (batch_tile, channel_tile) so blocks are lane-dense and VMEM-bounded."""
    # Channel tile: largest multiple of 128 (<= 512) that divides C; else full C.
    if C % _LANE == 0:
        tC = _LANE
        while tC * 2 <= min(C, 512) and C % (tC * 2) == 0:
            tC *= 2
    else:
        tC = C
    # Batch tile: group rows per grid step (amortizes step overhead and masked
    # stores when C < 128) while keeping the x block under the VMEM budget.
    Bb = 1
    while (Bb * 2 <= B and B % (Bb * 2) == 0
           and (Bb * 2) * T * tC * bytes_per_elem <= _TARGET_BLOCK_BYTES):
        Bb *= 2
    return Bb, tC


# ----------------------------- forward kernel -------------------------------
def _mobn_fwd_kernel(x_ref, w_ref, b_ref, y_ref, mean_ref, std_ref, *, eps, affine):
    # x_ref: (Bb, T, tC) block; stats are per-(batch row, channel).
    x = x_ref[...].astype(jnp.float32)                       # (Bb, T, tC)
    mean = jnp.mean(x, axis=1, keepdims=True)                # (Bb, 1, tC)
    xc = x - mean                                            # reused below
    var = jnp.mean(xc * xc, axis=1, keepdims=True)           # ddof=0 (unbiased=False)
    std = jnp.sqrt(var + eps)                                # (Bb, 1, tC)

    # Per-channel reciprocal (tiny tile) instead of T*C per-element divides.
    inv_std = pl.reciprocal(std, approx=False)               # exact; keeps tolerances
    if affine:
        scale = inv_std * w_ref[...].astype(jnp.float32)     # (Bb, 1, tC)
        shift = b_ref[...].astype(jnp.float32)                # (1, tC)
        y = xc * scale + shift                                # one mul+add / element
    else:
        y = xc * inv_std

    y_ref[...] = y.astype(y_ref.dtype)
    mean_ref[...] = mean.astype(mean_ref.dtype)
    std_ref[...] = std.astype(std_ref.dtype)


def mobn_forward(x, weight, bias, *, eps=EPS, affine=True):
    """x: (B, T, C); weight/bias: (C,). Returns (y, mean, stdev)."""
    B, T, C = x.shape
    Bb, tC = _choose_tiles(B, T, C)
    w2 = weight.reshape(1, C)
    b2 = bias.reshape(1, C)

    kernel = functools.partial(_mobn_fwd_kernel, eps=eps, affine=affine)
    y, mean, std = pl.pallas_call(
        kernel,
        out_shape=(
            jax.ShapeDtypeStruct((B, T, C), x.dtype),
            jax.ShapeDtypeStruct((B, 1, C), jnp.float32),
            jax.ShapeDtypeStruct((B, 1, C), jnp.float32),
        ),
        grid_spec=pltpu.PrefetchScalarGridSpec(
            num_scalar_prefetch=0,
            grid=(B // Bb, C // tC),
            in_specs=[
                pl.BlockSpec((Bb, T, tC), lambda b, c: (b, 0, c)),
                pl.BlockSpec((1, tC), lambda b, c: (0, c)),
                pl.BlockSpec((1, tC), lambda b, c: (0, c)),
            ],
            out_specs=[
                pl.BlockSpec((Bb, T, tC), lambda b, c: (b, 0, c)),
                pl.BlockSpec((Bb, 1, tC), lambda b, c: (b, 0, c)),
                pl.BlockSpec((Bb, 1, tC), lambda b, c: (b, 0, c)),
            ],
        ),
        compiler_params=pltpu.CompilerParams(
            dimension_semantics=("parallel", "parallel"),
            vmem_limit_bytes=_VMEM_LIMIT_BYTES,
        ),
    )(x, w2, b2)
    return y, mean, std


# ----------------------------- inverse kernel -------------------------------
def _mobn_inv_kernel(x_ref, mean_ref, std_ref, w_ref, b_ref, o_ref, *, eps, affine):
    y = x_ref[...].astype(jnp.float32)                        # (Bb, T, tC)
    mean = mean_ref[...]                                      # (Bb, 1, tC)
    std = std_ref[...]                                        # (Bb, 1, tC)
    if affine:
        w = w_ref[...].astype(jnp.float32)                    # (1, tC)
        b = b_ref[...].astype(jnp.float32)                    # (1, tC)
        inv_w = pl.reciprocal(w + eps * eps, approx=False)    # per-channel only
        scale = std * inv_w                                   # (Bb, 1, tC)
        shift = mean - b * scale                              # (Bb, 1, tC)
    else:
        scale = std
        shift = mean
    # Single mul+add pass per element; no per-element divides.
    o_ref[...] = (y * scale + shift).astype(o_ref.dtype)


def mobn_inverse(x, mean, stdev, weight, bias, *, eps=EPS, affine=True):
    """Denormalize: x: (B, T, C); mean/stdev: (B, 1, C); weight/bias: (C,)."""
    B, T, C = x.shape
    Bb, tC = _choose_tiles(B, T, C)
    w2 = weight.reshape(1, C)
    b2 = bias.reshape(1, C)

    kernel = functools.partial(_mobn_inv_kernel, eps=eps, affine=affine)
    out = pl.pallas_call(
        kernel,
        out_shape=jax.ShapeDtypeStruct((B, T, C), x.dtype),
        grid_spec=pltpu.PrefetchScalarGridSpec(
            num_scalar_prefetch=0,
            grid=(B // Bb, C // tC),
            in_specs=[
                pl.BlockSpec((Bb, T, tC), lambda b, c: (b, 0, c)),
                pl.BlockSpec((Bb, 1, tC), lambda b, c: (b, 0, c)),
                pl.BlockSpec((Bb, 1, tC), lambda b, c: (b, 0, c)),
                pl.BlockSpec((1, tC), lambda b, c: (0, c)),
                pl.BlockSpec((1, tC), lambda b, c: (0, c)),
            ],
            out_specs=pl.BlockSpec((Bb, T, tC), lambda b, c: (b, 0, c)),
        ),
        compiler_params=pltpu.CompilerParams(
            dimension_semantics=("parallel", "parallel"),
            vmem_limit_bytes=_VMEM_LIMIT_BYTES,
        ),
    )(x, mean, stdev, w2, b2)
    return out


# ----------------------------- reference (pure JAX) --------------------------
def mobn_forward_ref(x, weight, bias, eps=EPS):
    mean = jnp.mean(x, axis=1, keepdims=True)
    var = jnp.var(x, axis=1, keepdims=True)  # ddof=0 (unbiased=False)
    std = jnp.sqrt(var + eps)
    y = (x - mean) / std
    y = y * weight + bias
    return y, mean, std


def mobn_inverse_ref(y, mean, std, weight, bias, eps=EPS):
    x = (y - bias) / (weight + eps * eps)
    return x * std + mean


# ----------------------------------- main ------------------------------------
if __name__ == "__main__":
    # TODO(synk): the PyTorch module's `self.bn = nn.ModuleList([nn.BatchNorm1d])`
    # stores the class (never instantiated/called) -- dead code, not translated.
    B, T, C = 2, 8, 32  # batch, seq, num_features
    key = jax.random.PRNGKey(0)
    x = jax.random.normal(key, (B, T, C), dtype=jnp.float32)

    # Deterministic parameter init (matches nn.Parameter(ones/zeros)):
    affine_weight = jnp.ones((C,), dtype=jnp.float32)
    affine_bias = jnp.zeros((C,), dtype=jnp.float32)

    # forward mode
    y, mean, std = mobn_forward(x, affine_weight, affine_bias)
    jax.block_until_ready(y)

    y_ref, mean_ref, std_ref = mobn_forward_ref(x, affine_weight, affine_bias)
    assert jnp.allclose(y, y_ref, atol=1e-5, rtol=1e-5)
    assert jnp.allclose(mean, mean_ref, atol=1e-6, rtol=1e-6)
    assert jnp.allclose(std, std_ref, atol=1e-6, rtol=1e-6)

    # inverse mode (round-trip)
    x_rec = mobn_inverse(y, mean, std, affine_weight, affine_bias)
    jax.block_until_ready(x_rec)
    x_rec_ref = mobn_inverse_ref(y_ref, mean_ref, std_ref, affine_weight, affine_bias)
    assert jnp.allclose(x_rec, x_rec_ref, atol=1e-5, rtol=1e-5)
    assert jnp.allclose(x_rec, x, atol=1e-3, rtol=1e-3)

    print("KERNEL_OK")
</pallas_src>

<mosaic_0001>
module attributes {stable_mosaic.version = 11 : i64} {
  func.func @_mobn_fwd_kernel(%arg0: i32, %arg1: i32, %arg2: memref<2x8x32xf32, #tpu.memory_space<vmem>>, %arg3: memref<1x32xf32, #tpu.memory_space<vmem>>, %arg4: memref<1x32xf32, #tpu.memory_space<vmem>>, %arg5: memref<2x8x32xf32, #tpu.memory_space<vmem>>, %arg6: memref<2x1x32xf32, #tpu.memory_space<vmem>>, %arg7: memref<2x1x32xf32, #tpu.memory_space<vmem>>) attributes {dimension_semantics = [#tpu.dimension_semantics<parallel>, #tpu.dimension_semantics<parallel>], iteration_bounds = array<i64: 1, 1>, scalar_prefetch = 0 : i64, scratch_operands = 0 : i64, tpu.core_type = #tpu.core_type<tc>, window_params = [{transform_indices = @transform_0, window_bounds = array<i64: 2, 8, 32>}, {transform_indices = @transform_1, window_bounds = array<i64: 1, 32>}, {transform_indices = @transform_2, window_bounds = array<i64: 1, 32>}, {transform_indices = @transform_3, window_bounds = array<i64: 2, 8, 32>}, {transform_indices = @transform_4, window_bounds = array<i64: 2, 1, 32>}, {transform_indices = @transform_5, window_bounds = array<i64: 2, 1, 32>}]} {
    %c0 = arith.constant 0 : index
    %c0_0 = arith.constant 0 : index
    %c0_1 = arith.constant 0 : index
    %0 = vector.load %arg2[%c0, %c0_0, %c0_1] : memref<2x8x32xf32, #tpu.memory_space<vmem>>, vector<2x8x32xf32>
    %cst = arith.constant dense<0.000000e+00> : vector<2x32xf32>
    %1 = vector.multi_reduction <add>, %0, %cst [1] : vector<2x8x32xf32> to vector<2x32xf32>
    %2 = vector.shape_cast %1 : vector<2x32xf32> to vector<2x1x32xf32>
    %cst_2 = arith.constant 8.000000e+00 : f32
    %3 = vector.broadcast %cst_2 : f32 to vector<2x1x32xf32>
    %4 = arith.divf %2, %3 : vector<2x1x32xf32>
    %5 = vector.broadcast %4 : vector<2x1x32xf32> to vector<2x8x32xf32>
    %6 = arith.subf %0, %5 : vector<2x8x32xf32>
    %7 = arith.mulf %6, %6 : vector<2x8x32xf32>
    %cst_3 = arith.constant dense<0.000000e+00> : vector<2x32xf32>
    %8 = vector.multi_reduction <add>, %7, %cst_3 [1] : vector<2x8x32xf32> to vector<2x32xf32>
    %9 = vector.shape_cast %8 : vector<2x32xf32> to vector<2x1x32xf32>
    %cst_4 = arith.constant 8.000000e+00 : f32
    %10 = vector.broadcast %cst_4 : f32 to vector<2x1x32xf32>
    %11 = arith.divf %9, %10 : vector<2x1x32xf32>
    %cst_5 = arith.constant 9.99999974E-6 : f32
    %12 = vector.broadcast %cst_5 : f32 to vector<2x1x32xf32>
    %13 = arith.addf %11, %12 : vector<2x1x32xf32>
    %14 = math.sqrt %13 : vector<2x1x32xf32>
    %15 = tpu.reciprocal %14 : vector<2x1x32xf32> -> vector<2x1x32xf32>
    %c0_6 = arith.constant 0 : index
    %c0_7 = arith.constant 0 : index
    %16 = vector.load %arg3[%c0_6, %c0_7] : memref<1x32xf32, #tpu.memory_space<vmem>>, vector<1x32xf32>
    %17 = vector.shape_cast %16 : vector<1x32xf32> to vector<1x1x32xf32>
    %18 = vector.broadcast %17 : vector<1x1x32xf32> to vector<2x1x32xf32>
    %19 = arith.mulf %15, %18 : vector<2x1x32xf32>
    %c0_8 = arith.constant 0 : index
    %c0_9 = arith.constant 0 : index
    %20 = vector.load %arg4[%c0_8, %c0_9] : memref<1x32xf32, #tpu.memory_space<vmem>>, vector<1x32xf32>
    %21 = vector.broadcast %19 : vector<2x1x32xf32> to vector<2x8x32xf32>
    %22 = arith.mulf %6, %21 : vector<2x8x32xf32>
    %23 = vector.shape_cast %20 : vector<1x32xf32> to vector<1x1x32xf32>
    %24 = vector.broadcast %23 : vector<1x1x32xf32> to vector<2x8x32xf32>
    %25 = arith.addf %22, %24 : vector<2x8x32xf32>
    %c0_10 = arith.constant 0 : index
    %c0_11 = arith.constant 0 : index
    %c0_12 = arith.constant 0 : index
    %26 = vector.load %arg5[%c0_10, %c0_11, %c0_12] : memref<2x8x32xf32, #tpu.memory_space<vmem>>, vector<2x8x32xf32>
    tpu.vector_store %arg5[%c0_10, %c0_11, %c0_12], %25 {strides = array<i32>} : memref<2x8x32xf32, #tpu.memory_space<vmem>>, vector<2x8x32xf32>,
    %c0_13 = arith.constant 0 : index
    %c0_14 = arith.constant 0 : index
    %c0_15 = arith.constant 0 : index
    %27 = vector.load %arg6[%c0_13, %c0_14, %c0_15] : memref<2x1x32xf32, #tpu.memory_space<vmem>>, vector<2x1x32xf32>
    tpu.vector_store %arg6[%c0_13, %c0_14, %c0_15], %4 {strides = array<i32>} : memref<2x1x32xf32, #tpu.memory_space<vmem>>, vector<2x1x32xf32>,
    %c0_16 = arith.constant 0 : index
    %c0_17 = arith.constant 0 : index
    %c0_18 = arith.constant 0 : index
    %28 = vector.load %arg7[%c0_16, %c0_17, %c0_18] : memref<2x1x32xf32, #tpu.memory_space<vmem>>, vector<2x1x32xf32>
    tpu.vector_store %arg7[%c0_16, %c0_17, %c0_18], %14 {strides = array<i32>} : memref<2x1x32xf32, #tpu.memory_space<vmem>>, vector<2x1x32xf32>,
    return
  }
  func.func @transform_0(%arg0: i32, %arg1: i32) -> (i32, i32, i32) {
    %c0_i32 = arith.constant 0 : i32
    %c0_i32_0 = arith.constant 0 : i32
    return %arg0, %c0_i32, %arg1 : i32, i32, i32
  }
  func.func @transform_1(%arg0: i32, %arg1: i32) -> (i32, i32) {
    %c0_i32 = arith.constant 0 : i32
    %c0_i32_0 = arith.constant 0 : i32
    return %c0_i32, %arg1 : i32, i32
  }
  func.func @transform_2(%arg0: i32, %arg1: i32) -> (i32, i32) {
    %c0_i32 = arith.constant 0 : i32
    %c0_i32_0 = arith.constant 0 : i32
    return %c0_i32, %arg1 : i32, i32
  }
  func.func @transform_3(%arg0: i32, %arg1: i32) -> (i32, i32, i32) {
    %c0_i32 = arith.constant 0 : i32
    %c0_i32_0 = arith.constant 0 : i32
    return %arg0, %c0_i32, %arg1 : i32, i32, i32
  }
  func.func @transform_4(%arg0: i32, %arg1: i32) -> (i32, i32, i32) {
    %c0_i32 = arith.constant 0 : i32
    %c0_i32_0 = arith.constant 0 : i32
    return %arg0, %c0_i32, %arg1 : i32, i32, i32
  }
  func.func @transform_5(%arg0: i32, %arg1: i32) -> (i32, i32, i32) {
    %c0_i32 = arith.constant 0 : i32
    %c0_i32_0 = arith.constant 0 : i32
    return %arg0, %c0_i32, %arg1 : i32, i32, i32
  }
}

</mosaic_0001>

<llo_original>
// kernel: tpu_custom_call.1
$region0: #{tpu_custom_call.1}
  #allocation0 [shape = 'u32[]', space=smem, size = 0x4, offset = 0x4, fixed_abs, tag = 'smem constant byte address 0x4 - core index']
  #allocation1 [shape = 'u32[144,128]{1,0:T(1,128)}', space=vmem, size = 0x12000, scoped, tag = 'internal scratch']
  %s0 = inlined_call_operand.hbm [shape: f32[2,8,32], index: 0, kind: input, shape index: {}]
  %s1 = inlined_call_operand.vmem [shape: f32[1,32], index: 1, kind: input, shape index: {}]
  %s2 = inlined_call_operand.vmem [shape: f32[1,32], index: 2, kind: input, shape index: {}]
  %s3 = inlined_call_operand.hbm [shape: f32[2,8,32], index: 3, kind: output, shape index: {0}]
  %s4 = inlined_call_operand.hbm [shape: f32[2,1,32], index: 4, kind: output, shape index: {1}]
  %s5 = inlined_call_operand.hbm [shape: f32[2,1,32], index: 5, kind: output, shape index: {2}]
  %6 = xla_tuple %s3, %s4, %s5
  %s7 = sld [smem:[#allocation0]]
  $region42: #{tpu_custom_call.1} parent=0
    _
  %s9 = ssub.s32 1, %s7
  %s10 = scalar_select 0, %s9, %s7
  $region1: #{tpu_custom_call.1} parent=0
    #allocation2 [shape = 'u8[8192]{0}', space=vmem, size = 0x2000, scoped, tag = 'input window, operand 0, single buffered']
    #allocation3 [shape = 's32[1]{0}', space=sflag, size = 0x4, scoped, tag = 'scoped memory for tpu_custom_call.1']
    #allocation4 [shape = 's32[1]{0}', space=sflag, size = 0x4, scoped, tag = 'scoped memory for tpu_custom_call.1']
    #allocation5 [shape = 'u8[8192]{0}', space=vmem, size = 0x2000, scoped, tag = 'output window, operand 0, single buffered']
    #allocation6 [shape = 'u8[1024]{0}', space=vmem, size = 0x400, scoped, tag = 'output window, operand 1, single buffered']
    #allocation7 [shape = 's32[1]{0}', space=sflag, size = 0x4, scoped, tag = 'scoped memory for tpu_custom_call.1']
    #allocation8 [shape = 'u8[1024]{0}', space=vmem, size = 0x400, scoped, tag = 'output window, operand 2, single buffered']
    %11 = vsyncpa [#allocation3], 0
    %12 = vsyncpa [#allocation4], 0
    %13 = vsyncpa [#allocation7], 0
    // Predicated region
    $region2: #{tpu_custom_call.1} parent=1 // pred_check
      _
    $region3: #{tpu_custom_call.1} parent=1 // pred_check_branch
      %15 = sbr.rel (0) target = $region5
    $region4: #{tpu_custom_call.1} parent=1 // pred_region
      %s17 = ssub.s32 256, 256
      %18 = vsyncadd [#allocation3], %s17
      %s19 = sshll.u32 [#allocation2], 4
      %s20 = int_to_ptr.vmem [resolvable:$true] %s19
      %25 = dma.hbm_to_vmem [thread:$0]  %s0, 256, %s20, [#allocation3], 128, 128, 8
    $region5: #{tpu_custom_call.1} parent=1 // pred_fallthru
      _
    // Predicated region
    $region6: #{tpu_custom_call.1} parent=1 // pred_check
      _
    $region7: #{tpu_custom_call.1} parent=1 // pred_check_branch
      %27 = sbr.rel (0) target = $region9
    $region8: #{tpu_custom_call.1} parent=1 // pred_region
      _
    $region9: #{tpu_custom_call.1} parent=1 // pred_fallthru
      _
    // Predicated region
    $region10: #{tpu_custom_call.1} parent=1 // pred_check
      _
    $region11: #{tpu_custom_call.1} parent=1 // pred_check_branch
      %29 = sbr.rel (0) target = $region13
    $region12: #{tpu_custom_call.1} parent=1 // pred_region
      _
    $region13: #{tpu_custom_call.1} parent=1 // pred_fallthru
      _
    // Predicated region
    $region14: #{tpu_custom_call.1} parent=1 // pred_check
      _
    $region15: #{tpu_custom_call.1} parent=1 // pred_check_branch
      %31 = sbr.rel (0) target = $region17
    $region16: #{tpu_custom_call.1} parent=1 // pred_region
      %32 = dma.done [#allocation3], 256
    $region17: #{tpu_custom_call.1} parent=1 // pred_fallthru
      _
    %v33 = vld [vmem:[#allocation2] sm:$0xff]
    %v34 = vld [vmem:[#allocation2 + $0x8] sm:$0xff]
    %vm35 = vcmask 261120
    %v36 = vsel %vm35, %v33, 0.0
    %v37 = vrot.slane %v36, 4
    %v38 = vadd.f32 %v36, %v37
    %v39 = vrot.slane %v38, 2
    %v40 = vadd.f32 %v38, %v39
    %v41 = vrot.slane %v40, 1
    %v42 = vadd.f32 %v40, %v41
    %v43 = vsel %vm35, %v34, 0.0
    %v44 = vrot.slane %v43, 4
    %v45 = vadd.f32 %v43, %v44
    %v46 = vrot.slane %v45, 2
    %v47 = vadd.f32 %v45, %v46
    %v48 = vrot.slane %v47, 1
    %v49 = vadd.f32 %v47, %v48
    %v50 = vrcp.pop 8.0
    %v51 = vmul.f32 %v42, %v50
    %v52 = vmul.f32 %v49, %v50
    %v53 = vsub.f32 %v33, %v51
    %v54 = vsub.f32 %v34, %v52
    %v55 = vmul.f32 %v53, %v53
    %v56 = vmul.f32 %v54, %v54
    %v57 = vsel %vm35, %v55, 0.0
    %v58 = vrot.slane %v57, 4
    %v59 = vadd.f32 %v57, %v58
    %v60 = vrot.slane %v59, 2
    %v61 = vadd.f32 %v59, %v60
    %v62 = vrot.slane %v61, 1
    %v63 = vadd.f32 %v61, %v62
    %v64 = vsel %vm35, %v56, 0.0
    %v65 = vrot.slane %v64, 4
    %v66 = vadd.f32 %v64, %v65
    %v67 = vrot.slane %v66, 2
    %v68 = vadd.f32 %v66, %v67
    %v69 = vrot.slane %v68, 1
    %v70 = vadd.f32 %v68, %v69
    %v71 = vmul.f32 %v63, %v50
    %v72 = vmul.f32 %v70, %v50
    %v73 = vadd.f32 %v71, 1e-05
    %v74 = vadd.f32 %v72, 1e-05
    %v75 = vrsqrt.pop %v73
    %v76 = vmul.f32 %v73, %v75
    %vm77 = vcmp.eq.f32.partialorder %v73, inf
    %v78 = vsel %vm77, %v73, %v76
    %vm79 = vcmp.eq.f32.partialorder %v73, 0.0
    %v80 = vand.u32 %v73, 2147483648
    %v81 = vsel %vm79, %v80, %v78
    %v82 = vrsqrt.pop %v74
    %v83 = vmul.f32 %v74, %v82
    %vm84 = vcmp.eq.f32.partialorder %v74, inf
    %v85 = vsel %vm84, %v74, %v83
    %vm86 = vcmp.eq.f32.partialorder %v74, 0.0
    %v87 = vand.u32 %v74, 2147483648
    %v88 = vsel %vm86, %v87, %v85
    %v89 = vrcp.pop %v81
    %v90 = vrcp.pop %v88
    %v91 = vld [vmem:[%s1] sm:$0x1]
    %v92 = vmul.f32 %v89, %v91
    %v93 = vmul.f32 %v90, %v91
    %v94 = vld [vmem:[%s2] sm:$0x1]
    %v95 = vlaneseq
    %v96 = vshrl.u32 %v95, 7
    %v97 = vsub.s32 0, %v96
    %v98 = vrot.slane %v92, %v97
    %v99 = vlaneseq
    %v100 = vshrl.u32 %v99, 7
    %v101 = vsub.s32 0, %v100
    %v102 = vrot.slane %v93, %v101
    %v103 = vmul.f32 %v53, %v98
    %v104 = vmul.f32 %v54, %v102
    %v106 = vlaneseq
    %v107 = vshrl.u32 %v106, 7
    %v108 = vsub.s32 0, %v107
    %v109 = vrot.slane %v94, %v108
    %v111 = vadd.f32 %v103, %v109
    %v112 = vadd.f32 %v104, %v109
    %113 = vst.msk [vmem:[#allocation5] sm:$0xff] %vm35, %v111
    %114 = vst.msk [vmem:[#allocation5 + $0x8] sm:$0xff] %vm35, %v112
    %vm115 = vcmask 253952
    %116 = vst.msk [vmem:[#allocation6] sm:$0x1] %vm115, %v51
    %117 = vst.msk [vmem:[#allocation6 + $0x1] sm:$0x1] %vm115, %v52
    %118 = vst.msk [vmem:[#allocation8] sm:$0x1] %vm115, %v81
    %119 = vst.msk [vmem:[#allocation8 + $0x1] sm:$0x1] %vm115, %v88
    // Predicated region
    $region18: #{tpu_custom_call.1} parent=1 // pred_check
      _
    $region19: #{tpu_custom_call.1} parent=1 // pred_check_branch
      %121 = sbr.rel (0) target = $region21
    $region20: #{tpu_custom_call.1} parent=1 // pred_region
      %s123 = ssub.s32 256, 256
      %124 = vsyncadd [#allocation4], %s123
      %s125 = sshll.u32 [#allocation5], 4
      %s126 = int_to_ptr.vmem [resolvable:$true] %s125
      %131 = dma.vmem_to_hbm [thread:$0]  %s126, 256, %s3, [#allocation4], 128, 128, 8
    $region21: #{tpu_custom_call.1} parent=1 // pred_fallthru
      _
    // Predicated region
    $region22: #{tpu_custom_call.1} parent=1 // pred_check
      _
    $region23: #{tpu_custom_call.1} parent=1 // pred_check_branch
      %133 = sbr.rel (0) target = $region25
    $region24: #{tpu_custom_call.1} parent=1 // pred_region
      %s135 = ssub.s32 32, 32
      %136 = vsyncadd [#allocation7], %s135
      %s137 = sshll.u32 [#allocation6], 4
      %s138 = int_to_ptr.vmem [resolvable:$true] %s137
      %143 = dma.vmem_to_hbm [thread:$0]  %s138, 32, %s4, [#allocation7], 16, 16, 1
    $region25: #{tpu_custom_call.1} parent=1 // pred_fallthru
      _
    // Predicated region
    $region26: #{tpu_custom_call.1} parent=1 // pred_check
      _
    $region27: #{tpu_custom_call.1} parent=1 // pred_check_branch
      %145 = sbr.rel (0) target = $region29
    $region28: #{tpu_custom_call.1} parent=1 // pred_region
      %s147 = ssub.s32 32, 32
      %148 = vsyncadd [#allocation7], %s147
      %s149 = sshll.u32 [#allocation8], 4
      %s150 = int_to_ptr.vmem [resolvable:$true] %s149
      %155 = dma.vmem_to_hbm [thread:$0]  %s150, 32, %s5, [#allocation7], 16, 16, 1
    $region29: #{tpu_custom_call.1} parent=1 // pred_fallthru
      _
    // Predicated region
    $region30: #{tpu_custom_call.1} parent=1 // pred_check
      _
    $region31: #{tpu_custom_call.1} parent=1 // pred_check_branch
      %157 = sbr.rel (0) target = $region33
    $region32: #{tpu_custom_call.1} parent=1 // pred_region
      %158 = dma.done [#allocation4], 256
    $region33: #{tpu_custom_call.1} parent=1 // pred_fallthru
      _
    // Predicated region
    $region34: #{tpu_custom_call.1} parent=1 // pred_check
      _
    $region35: #{tpu_custom_call.1} parent=1 // pred_check_branch
      %160 = sbr.rel (0) target = $region37
    $region36: #{tpu_custom_call.1} parent=1 // pred_region
      %161 = dma.done [#allocation7], 32
    $region37: #{tpu_custom_call.1} parent=1 // pred_fallthru
      _
    // Predicated region
    $region38: #{tpu_custom_call.1} parent=1 // pred_check
      _
    $region39: #{tpu_custom_call.1} parent=1 // pred_check_branch
      %163 = sbr.rel (0) target = $region41
    $region40: #{tpu_custom_call.1} parent=1 // pred_region
      %164 = dma.done [#allocation7], 32
    $region41: #{tpu_custom_call.1} parent=1 // pred_fallthru
      _
    %165 = vsyncpa [#allocation3], 1
    %166 = vsyncpa [#allocation4], 1
    %167 = vsyncpa [#allocation7], 1

</llo_original>
